<compile_context>
chip_gen: v6e
topology: v6e:2x2x1
jax: 0.10.0
libtpu: 0.0.40
codegen_flags: <defaults>
</compile_context>

<pallas_src>
import jax
import jax.numpy as jnp
from jax.experimental import pallas as pl
from jax.experimental.pallas import tpu as pltpu


# ----------------------------- Pallas kernel -----------------------------

def _linear_kernel(x_ref, w_ref, b_ref, o_ref):
    """One (TM, TN) f32 output tile, accumulated in-place over the K axis.

    Grid axes: (j over N-tiles, i over M-tiles, k over K-tiles); K innermost.
    The output block index is independent of k, so o_ref is resident in VMEM
    for the whole K loop and only written back to HBM once per (i, j) tile.
    """
    k = pl.program_id(2)

    @pl.when(k == 0)
    def _():
        # Bias is applied exactly once per output tile, at init.
        o_ref[...] = jnp.broadcast_to(b_ref[...], o_ref.shape)

    # bf16 x bf16 -> f32 accumulation on the MXU, added straight into o_ref.
    o_ref[...] += jnp.dot(x_ref[...], w_ref[...],
                          preferred_element_type=jnp.float32)


def _round_up(x, m):
    return (x + m - 1) // m * m


def _pad2d(a, rows, cols):
    r, c = a.shape
    if r == rows and c == cols:
        return a
    return jnp.pad(a, ((0, rows - r), (0, cols - c)))


def pallas_linear(x2d, w, b, *, tm=256, tn=256, tk=512):
    """y = x2d @ w + b on the TPU MXU.

    x2d: (N, D_in) f32, w: (D_in, D_out) f32, b: (1, D_out) f32.
    Internally computes in bf16 (f32 accumulation) on zero-padded,
    tile-aligned operands; returns (N, D_out) f32.
    """
    N, Din = x2d.shape
    Dout = w.shape[1]

    # Tile sizes: TM multiple of 16 (bf16 sublane pack), TN/TK multiples of
    # 128 lanes; capped at 256/256/512 which fits the 64 MiB VMEM of v7x with
    # large margin while keeping 256-wide MXU tiles fed on v6e/v7x and
    # 128-granular mapping on v5e.
    TM = min(tm, _round_up(N, 16))
    TN = min(tn, _round_up(Dout, 128))
    TK = min(tk, _round_up(Din, 128))

    Np = _round_up(N, TM)
    Dinp = _round_up(Din, TK)
    Doutp = _round_up(Dout, TN)

    # bf16 MXU inputs (zero padding contributes nothing to the dot); bias f32.
    x_p = _pad2d(x2d.astype(jnp.bfloat16), Np, Dinp)
    w_p = _pad2d(w.astype(jnp.bfloat16), Dinp, Doutp)
    b_p = _pad2d(b.astype(jnp.float32), 1, Doutp)

    mt, nt, kt = Np // TM, Doutp // TN, Dinp // TK

    # Per-operand tile footprint, double-buffered (no extra scratch).
    tile_bytes = 2 * (TM * TK * 2 + TK * TN * 2 + TN * 4 + TM * TN * 4)
    vmem_limit = int(min(32 * 1024 * 1024,
                         max(16 * 1024 * 1024, 4 * tile_bytes)))

    cost = pl.CostEstimate(
        flops=2 * Np * Dinp * Doutp,
        transcendentals=0,
        bytes_accessed=(Np * Dinp * 2 + Dinp * Doutp * 2
                        + Np * Doutp * 4 + Doutp * 4),
    )

    out_p = pl.pallas_call(
        _linear_kernel,
        out_shape=jax.ShapeDtypeStruct((Np, Doutp), jnp.float32),
        grid_spec=pltpu.PrefetchScalarGridSpec(
            num_scalar_prefetch=0,
            # Grid: N-tiles outermost, M-tiles, K-tiles innermost (reduction
            # last).  W's block index depends only on (k, j), so with a
            # single K tile the same W tile stays resident across M steps.
            grid=(nt, mt, kt),
            in_specs=[
                pl.BlockSpec((TM, TK), lambda j, i, k: (i, k)),   # x
                pl.BlockSpec((TK, TN), lambda j, i, k: (k, j)),   # W
                pl.BlockSpec((1, TN), lambda j, i, k: (0, j)),    # bias
            ],
            out_specs=pl.BlockSpec((TM, TN), lambda j, i, k: (i, j)),
        ),
        compiler_params=pltpu.CompilerParams(
            dimension_semantics=("parallel", "parallel", "arbitrary"),
            vmem_limit_bytes=vmem_limit,
        ),
        cost_estimate=cost,
    )(x_p, w_p, b_p)

    if Np != N or Doutp != Dout:
        out_p = out_p[:N, :Dout]
    return out_p.astype(x2d.dtype)


# ------------------------- Inner module (synthetic) -----------------------

class InnerLinear:
    """Synthetic 'twice-wrapped' module: a single Linear layer."""

    def __init__(self, key, d_in, d_out):
        kw, kb = jax.random.split(key)
        self.weight = jax.random.normal(kw, (d_in, d_out), jnp.float32) * 0.02
        self.bias = jax.random.normal(kb, (1, d_out), jnp.float32) * 0.02
        self.xyz = "hello world"   # attribute to exercise __getattr__ forwarding

    def state_dict(self):
        return {"weight": self.weight, "bias": self.bias}

    def load_state_dict(self, sd):
        self.weight = sd["weight"]
        self.bias = sd["bias"]

    def __call__(self, x):
        # x: (B, T, D_in) -> (B, T, D_out); hot path runs in the Pallas kernel.
        B, T, Din = x.shape
        y2d = pallas_linear(x.reshape(B * T, Din), self.weight, self.bias)
        return y2d.reshape(B, T, -1)


class FakeDDP:
    """Stand-in for torch DistributedDataParallel: owns `.module`,
    forwards calls to it (gradient sync has no meaning in this inference path)."""

    def __init__(self, module):
        self.module = module

    def __call__(self, *args, **kwargs):
        return self.module(*args, **kwargs)


class WrappedJaxDDP:
    """JAX port of WrappedTorchDDP wrapper semantics."""

    def __init__(self, module):
        assert hasattr(module, "module"), \
            "WrappedJaxDDP expects input to wrap another module"
        self.module = module

    def __getattr__(self, name):
        # Forward missing attributes to the (twice-)wrapped module.
        # (plain attrs resolve normally; this only fires on misses)
        try:
            return getattr(self.__dict__["module"], name)
        except AttributeError:
            return getattr(self.__dict__["module"].module, name)

    def state_dict(self, *args, **kwargs):
        return self.module.module.state_dict(*args, **kwargs)

    def load_state_dict(self, *args, **kwargs):
        return self.module.module.load_state_dict(*args, **kwargs)

    def forward(self, *args, **kwargs):
        # TODO(synk): DDP gradient all-reduce / bucketing has no Pallas
        # equivalent in a forward-only kernel; forward is pure delegation.
        return self.module(*args, **kwargs)

    __call__ = forward


# --------------------------------- main -----------------------------------

if __name__ == "__main__":
    key = jax.random.PRNGKey(0)
    k_x, k_m = jax.random.split(key)

    # Lane-dense hidden dims (>=128); batch/seq stay small.
    B, T, D_IN, D_OUT = 2, 8, 128, 256
    x = jax.random.normal(k_x, (B, T, D_IN), jnp.float32)

    inner = InnerLinear(k_m, D_IN, D_OUT)
    ddp = FakeDDP(inner)
    wrapped = WrappedJaxDDP(ddp)

    # Wrapper semantics checks (attribute + state_dict forwarding).
    assert wrapped.xyz == "hello world"
    assert set(wrapped.state_dict().keys()) == set(inner.state_dict().keys())

    # Forward pass (Pallas kernel on the hot path).
    y = wrapped(x)
    y = jax.block_until_ready(y)

    # Reference check against plain JAX (same bf16 input rounding as kernel).
    xb = x.reshape(B * T, D_IN).astype(jnp.bfloat16).astype(jnp.float32)
    wb = inner.weight.astype(jnp.bfloat16).astype(jnp.float32)
    y_ref = (xb @ wb + inner.bias).reshape(B, T, D_OUT)

    assert y.shape == (B, T, D_OUT)
    assert jnp.allclose(y, y_ref, atol=2e-3, rtol=2e-3), \
        float(jnp.max(jnp.abs(y - y_ref)))

    print("KERNEL_OK")
</pallas_src>

<mosaic_0001>
module attributes {stable_mosaic.version = 11 : i64} {
  func.func @_linear_kernel(%arg0: i32, %arg1: i32, %arg2: i32, %arg3: memref<16x128xbf16, #tpu.memory_space<vmem>>, %arg4: memref<128x256xbf16, #tpu.memory_space<vmem>>, %arg5: memref<1x256xf32, #tpu.memory_space<vmem>>, %arg6: memref<16x256xf32, #tpu.memory_space<vmem>>) attributes {dimension_semantics = [#tpu.dimension_semantics<parallel>, #tpu.dimension_semantics<parallel>, #tpu.dimension_semantics<arbitrary>], iteration_bounds = array<i64: 1, 1, 1>, scalar_prefetch = 0 : i64, scratch_operands = 0 : i64, tpu.core_type = #tpu.core_type<tc>, window_params = [{transform_indices = @transform_0, window_bounds = array<i64: 16, 128>}, {transform_indices = @transform_1, window_bounds = array<i64: 128, 256>}, {transform_indices = @transform_2, window_bounds = array<i64: 1, 256>}, {transform_indices = @transform_3, window_bounds = array<i64: 16, 256>}]} {
    %c0_i32 = arith.constant 0 : i32
    %0 = arith.cmpi eq, %arg2, %c0_i32 : i32
    %1 = arith.extui %0 : i1 to i32
    %c0_i32_0 = arith.constant 0 : i32
    %2 = arith.cmpi ne, %1, %c0_i32_0 : i32
    scf.if %2 {
      %c0_8 = arith.constant 0 : index
      %c0_9 = arith.constant 0 : index
      %9 = vector.load %arg5[%c0_8, %c0_9] : memref<1x256xf32, #tpu.memory_space<vmem>>, vector<1x256xf32>
      %10 = vector.shape_cast %9 : vector<1x256xf32> to vector<1x256xf32>
      %11 = vector.broadcast %10 : vector<1x256xf32> to vector<16x256xf32>
      %c0_10 = arith.constant 0 : index
      %c0_11 = arith.constant 0 : index
      %12 = vector.load %arg6[%c0_10, %c0_11] : memref<16x256xf32, #tpu.memory_space<vmem>>, vector<16x256xf32>
      tpu.vector_store %arg6[%c0_10, %c0_11], %11 {strides = array<i32>} : memref<16x256xf32, #tpu.memory_space<vmem>>, vector<16x256xf32>,
    } else {
    }
    %c0 = arith.constant 0 : index
    %c0_1 = arith.constant 0 : index
    %3 = vector.load %arg6[%c0, %c0_1] : memref<16x256xf32, #tpu.memory_space<vmem>>, vector<16x256xf32>
    %c0_2 = arith.constant 0 : index
    %c0_3 = arith.constant 0 : index
    %4 = vector.load %arg3[%c0_2, %c0_3] : memref<16x128xbf16, #tpu.memory_space<vmem>>, vector<16x128xbf16>
    %c0_4 = arith.constant 0 : index
    %c0_5 = arith.constant 0 : index
    %5 = vector.load %arg4[%c0_4, %c0_5] : memref<128x256xbf16, #tpu.memory_space<vmem>>, vector<128x256xbf16>
    %cst = arith.constant dense<0.000000e+00> : vector<16x256xf32>
    %6 = tpu.matmul %4, %5, %cst {dimension_numbers = #tpu.dot_dimension_numbers<[1], [0], [0], [1], [0, 0, 1, 1], [], []>} : vector<16x128xbf16>, vector<128x256xbf16>, vector<16x256xf32> -> vector<16x256xf32>
    %7 = arith.addf %3, %6 : vector<16x256xf32>
    %c0_6 = arith.constant 0 : index
    %c0_7 = arith.constant 0 : index
    %8 = vector.load %arg6[%c0_6, %c0_7] : memref<16x256xf32, #tpu.memory_space<vmem>>, vector<16x256xf32>
    tpu.vector_store %arg6[%c0_6, %c0_7], %7 {strides = array<i32>} : memref<16x256xf32, #tpu.memory_space<vmem>>, vector<16x256xf32>,
    return
  }
  func.func @transform_0(%arg0: i32, %arg1: i32, %arg2: i32) -> (i32, i32) {
    %c0_i32 = arith.constant 0 : i32
    return %arg1, %arg2 : i32, i32
  }
  func.func @transform_1(%arg0: i32, %arg1: i32, %arg2: i32) -> (i32, i32) {
    %c0_i32 = arith.constant 0 : i32
    return %arg2, %arg0 : i32, i32
  }
  func.func @transform_2(%arg0: i32, %arg1: i32, %arg2: i32) -> (i32, i32) {
    %c0_i32 = arith.constant 0 : i32
    %c0_i32_0 = arith.constant 0 : i32
    return %c0_i32, %arg0 : i32, i32
  }
  func.func @transform_3(%arg0: i32, %arg1: i32, %arg2: i32) -> (i32, i32) {
    %c0_i32 = arith.constant 0 : i32
    return %arg1, %arg0 : i32, i32
  }
}

</mosaic_0001>

<llo_original>
// kernel: tpu_custom_call.1
$region0: #{tpu_custom_call.1}
  #allocation0 [shape = 'u32[]', space=smem, size = 0x4, offset = 0x4, fixed_abs, tag = 'smem constant byte address 0x4 - core index']
  #allocation1 [shape = 'u32[144,128]{1,0:T(1,128)}', space=vmem, size = 0x12000, scoped, tag = 'internal scratch']
  %s0 = inlined_call_operand.hbm [shape: bf16[16,128], index: 0, kind: input, shape index: {}]
  %s1 = inlined_call_operand.hbm [shape: bf16[128,256], index: 1, kind: input, shape index: {}]
  %s2 = inlined_call_operand.vmem [shape: f32[1,256], index: 2, kind: input, shape index: {}]
  %s3 = inlined_call_operand.hbm [shape: f32[16,256], index: 3, kind: output, shape index: {}]
  %s4 = sld [smem:[#allocation0]]
  $region34: #{tpu_custom_call.1} parent=0
    _
  %s6 = ssub.s32 1, %s4
  %s7 = scalar_select 0, %s6, %s4
  $region1: #{tpu_custom_call.1} parent=0
    #allocation2 [shape = 'u8[4096]{0}', space=vmem, size = 0x1000, scoped, tag = 'input window, operand 0, single buffered']
    #allocation3 [shape = 's32[1]{0}', space=sflag, size = 0x4, scoped, tag = 'scoped memory for tpu_custom_call.1']
    #allocation4 [shape = 's32[1]{0}', space=sflag, size = 0x4, scoped, tag = 'scoped memory for tpu_custom_call.1']
    #allocation5 [shape = 'u8[65536]{0}', space=vmem, size = 0x10000, scoped, tag = 'input window, operand 1, single buffered']
    #allocation6 [shape = 's32[1]{0}', space=sflag, size = 0x4, scoped, tag = 'scoped memory for tpu_custom_call.1']
    #allocation7 [shape = 'u8[16384]{0}', space=vmem, size = 0x4000, scoped, tag = 'output window, operand 0, single buffered']
    %8 = vsyncpa [#allocation3], 0
    %9 = vsyncpa [#allocation6], 0
    %10 = vsyncpa [#allocation4], 0
    // Predicated region
    $region2: #{tpu_custom_call.1} parent=1 // pred_check
      _
    $region3: #{tpu_custom_call.1} parent=1 // pred_check_branch
      %12 = sbr.rel (0) target = $region5
    $region4: #{tpu_custom_call.1} parent=1 // pred_region
      %s14 = ssub.s32 128, 128
      %15 = vsyncadd [#allocation3], %s14
      %s16 = sshll.u32 [#allocation2], 4
      %s17 = int_to_ptr.vmem [resolvable:$true] %s16
      %22 = dma.hbm_to_vmem [thread:$0]  %s0, 128, %s17, [#allocation3], 64, 64, 4
    $region5: #{tpu_custom_call.1} parent=1 // pred_fallthru
      _
    // Predicated region
    $region6: #{tpu_custom_call.1} parent=1 // pred_check
      _
    $region7: #{tpu_custom_call.1} parent=1 // pred_check_branch
      %24 = sbr.rel (0) target = $region9
    $region8: #{tpu_custom_call.1} parent=1 // pred_region
      %s26 = ssub.s32 2048, 2048
      %27 = vsyncadd [#allocation6], %s26
      %s28 = sshll.u32 [#allocation5], 4
      %s29 = int_to_ptr.vmem [resolvable:$true] %s28
      %34 = dma.hbm_to_vmem [thread:$0]  %s1, 2048, %s29, [#allocation6], 128, 128, 8
    $region9: #{tpu_custom_call.1} parent=1 // pred_fallthru
      _
    // Predicated region
    $region10: #{tpu_custom_call.1} parent=1 // pred_check
      _
    $region11: #{tpu_custom_call.1} parent=1 // pred_check_branch
      %36 = sbr.rel (0) target = $region13
    $region12: #{tpu_custom_call.1} parent=1 // pred_region
      _
    $region13: #{tpu_custom_call.1} parent=1 // pred_fallthru
      _
    // Predicated region
    $region14: #{tpu_custom_call.1} parent=1 // pred_check
      _
    $region15: #{tpu_custom_call.1} parent=1 // pred_check_branch
      %38 = sbr.rel (0) target = $region17
    $region16: #{tpu_custom_call.1} parent=1 // pred_region
      %39 = dma.done [#allocation3], 128
    $region17: #{tpu_custom_call.1} parent=1 // pred_fallthru
      _
    // Predicated region
    $region18: #{tpu_custom_call.1} parent=1 // pred_check
      _
    $region19: #{tpu_custom_call.1} parent=1 // pred_check_branch
      %41 = sbr.rel (0) target = $region21
    $region20: #{tpu_custom_call.1} parent=1 // pred_region
      %42 = dma.done [#allocation6], 2048
    $region21: #{tpu_custom_call.1} parent=1 // pred_fallthru
      _
    %p44 = scmp.eq.s32.totalorder 0, 0
    // Predicated region
    $region22: #{tpu_custom_call.1} parent=1 // pred_check
      %p45 = pneg %p44
    $region23: #{tpu_custom_call.1} parent=1 // pred_check_branch
      %47 = sbr.rel (%p45) target = $region25
    $region24: #{tpu_custom_call.1} parent=1 // pred_region
      %v48 = vld [vmem:[%s2] sm:$0x3]
      %v50 = vlaneseq
      %v51 = vshrl.u32 %v50, 7
      %v52 = vsub.s32 0, %v51
      %v53 = vrot.slane %v48, %v52
      %v54 = vlaneseq
      %v55 = vshrl.u32 %v54, 7
      %v56 = vsub.s32 1, %v55
      %v57 = vrot.slane %v48, %v56
      %60 = vst [vmem:[#allocation7] sm:$0xff] %v53
      %61 = vst [vmem:[#allocation7 + $0x8] sm:$0xff] %v57
      %62 = vst [vmem:[#allocation7 + $0x10] sm:$0xff] %v53
      %63 = vst [vmem:[#allocation7 + $0x18] sm:$0xff] %v57
    $region25: #{tpu_custom_call.1} parent=1 // pred_fallthru
      _
    %v64 = vld [vmem:[#allocation7] sm:$0xff]
    %v65 = vld [vmem:[#allocation7 + $0x8] sm:$0xff]
    %v66 = vld [vmem:[#allocation7 + $0x10] sm:$0xff]
    %v67 = vld [vmem:[#allocation7 + $0x18] sm:$0xff]
    %v68 = vld [vmem:[#allocation2] sm:$0xf]
    %v69 = vld [vmem:[#allocation2 + $0x4] sm:$0xf]
    %v70 = vld [vmem:[#allocation5] sm:$0xff]
    %v71 = vld [vmem:[#allocation5 + $0x8] sm:$0xff]
    %v72 = vld [vmem:[#allocation5 + $0x10] sm:$0xff]
    %v73 = vld [vmem:[#allocation5 + $0x18] sm:$0xff]
    %v74 = vld [vmem:[#allocation5 + $0x20] sm:$0xff]
    %v75 = vld [vmem:[#allocation5 + $0x28] sm:$0xff]
    %v76 = vld [vmem:[#allocation5 + $0x30] sm:$0xff]
    %v77 = vld [vmem:[#allocation5 + $0x38] sm:$0xff]
    %v78 = vld [vmem:[#allocation5 + $0x40] sm:$0xff]
    %v79 = vld [vmem:[#allocation5 + $0x48] sm:$0xff]
    %v80 = vld [vmem:[#allocation5 + $0x50] sm:$0xff]
    %v81 = vld [vmem:[#allocation5 + $0x58] sm:$0xff]
    %v82 = vld [vmem:[#allocation5 + $0x60] sm:$0xff]
    %v83 = vld [vmem:[#allocation5 + $0x68] sm:$0xff]
    %v84 = vld [vmem:[#allocation5 + $0x70] sm:$0xff]
    %v85 = vld [vmem:[#allocation5 + $0x78] sm:$0xff]
    %v88 = vunpack.c.l.b16 %v68
    %v89 = vunpack.c.l.b16 %v69
    %v90 = vpack.c.b16 %v89, %v88
    %v108 = vunpack.c.l.b16 %v70
    %v109 = vunpack.c.h.b16 %v70
    %v110 = vunpack.c.l.b16 %v71
    %v111 = vunpack.c.h.b16 %v71
    %v112 = vunpack.c.l.b16 %v72
    %v113 = vunpack.c.h.b16 %v72
    %v114 = vunpack.c.l.b16 %v73
    %v115 = vunpack.c.h.b16 %v73
    %v116 = vunpack.c.l.b16 %v74
    %v117 = vunpack.c.h.b16 %v74
    %v118 = vunpack.c.l.b16 %v75
    %v119 = vunpack.c.h.b16 %v75
    %v120 = vunpack.c.l.b16 %v76
    %v121 = vunpack.c.h.b16 %v76
    %v122 = vunpack.c.l.b16 %v77
    %v123 = vunpack.c.h.b16 %v77
    %v124 = vunpack.c.l.b16 %v78
    %v125 = vunpack.c.h.b16 %v78
    %v126 = vunpack.c.l.b16 %v79
    %v127 = vunpack.c.h.b16 %v79
    %v128 = vunpack.c.l.b16 %v80
    %v129 = vunpack.c.h.b16 %v80
    %v130 = vunpack.c.l.b16 %v81
    %v131 = vunpack.c.h.b16 %v81
    %v132 = vunpack.c.l.b16 %v82
    %v133 = vunpack.c.h.b16 %v82
    %v134 = vunpack.c.l.b16 %v83
    %v135 = vunpack.c.h.b16 %v83
    %v136 = vunpack.c.l.b16 %v84
    %v137 = vunpack.c.h.b16 %v84
    %v138 = vunpack.c.l.b16 %v85
    %v139 = vunpack.c.h.b16 %v85
    %v140 = vpack.c.b16 %v110, %v108
    %v141 = vpack.c.b16 %v111, %v109
    %v142 = vpack.c.b16 %v114, %v112
    %v143 = vpack.c.b16 %v115, %v113
    %v144 = vpack.c.b16 %v118, %v116
    %v145 = vpack.c.b16 %v119, %v117
    %v146 = vpack.c.b16 %v122, %v120
    %v147 = vpack.c.b16 %v123, %v121
    %v148 = vpack.c.b16 %v126, %v124
    %v149 = vpack.c.b16 %v127, %v125
    %v150 = vpack.c.b16 %v130, %v128
    %v151 = vpack.c.b16 %v131, %v129
    %v152 = vpack.c.b16 %v134, %v132
    %v153 = vpack.c.b16 %v135, %v133
    %v154 = vpack.c.b16 %v138, %v136
    %v155 = vpack.c.b16 %v139, %v137
    %172 = vmatprep.subr.bf16.mxu0 %v155
    %173 = vmatpush1.bf16.msra.mxu0 %v154
    %174 = vmatprep.subr.bf16.mxu0 %v153
    %175 = vmatpush1.bf16.msra.mxu0 %v152
    %176 = vmatprep.subr.bf16.mxu0 %v151
    %177 = vmatpush1.bf16.msra.mxu0 %v150
    %178 = vmatprep.subr.bf16.mxu0 %v149
    %179 = vmatpush1.bf16.msra.mxu0 %v148
    %180 = vmatprep.subr.bf16.mxu0 %v147
    %181 = vmatpush1.bf16.msra.mxu0 %v146
    %182 = vmatprep.subr.bf16.mxu0 %v145
    %183 = vmatpush1.bf16.msra.mxu0 %v144
    %184 = vmatprep.subr.bf16.mxu0 %v143
    %185 = vmatpush1.bf16.msra.mxu0 %v142
    %186 = vmatprep.subr.bf16.mxu0 %v141
    %187 = vmatpush1.bf16.msra.mxu0 %v140
    %188 = vmatprep.subr.bf16.mxu0 0
    %189 = vmatpush2.bf16.msra.mxu0 0
    %190 = vmatprep.subr.bf16.mxu0 0
    %191 = vmatpush2.bf16.msra.mxu0 0
    %192 = vmatprep.subr.bf16.mxu0 0
    %193 = vmatpush2.bf16.msra.mxu0 0
    %194 = vmatprep.subr.bf16.mxu0 0
    %195 = vmatpush2.bf16.msra.mxu0 0
    %196 = vmatprep.subr.bf16.mxu0 0
    %197 = vmatpush2.bf16.msra.mxu0 0
    %198 = vmatprep.subr.bf16.mxu0 0
    %199 = vmatpush2.bf16.msra.mxu0 0
    %200 = vmatprep.subr.bf16.mxu0 0
    %201 = vmatpush2.bf16.msra.mxu0 0
    %202 = vmatprep.subr.bf16.mxu0 0
    %203 = vmatpush2.bf16.msra.mxu0 0
    %204 = vmatprep.mubr.bf16.mxu0 0
    %205 = vmatmul.mubr.bf16.gmra.mxu0 %v90
    %v206 = vpop.f32.mrf.mxu0
    %v207 = vadd.f32 0.0, %v206
    %v208 = vpop.f32.mrf.mxu0
    %v209 = vadd.f32 0.0, %v208
    %v210 = vpop.f32.mrf.mxu0
    %v211 = vadd.f32 0.0, %v210
    %v212 = vpop.f32.mrf.mxu0
    %v213 = vadd.f32 0.0, %v212
    %214 = vdwg.mxu0
    %v215 = vadd.f32 %v64, %v207
    %v216 = vadd.f32 %v65, %v209
    %v217 = vadd.f32 %v66, %v211
    %v218 = vadd.f32 %v67, %v213
    %219 = vst [vmem:[#allocation7] sm:$0xff] %v215
    %220 = vst [vmem:[#allocation7 + $0x8] sm:$0xff] %v216
    %221 = vst [vmem:[#allocation7 + $0x10] sm:$0xff] %v217
    %222 = vst [vmem:[#allocation7 + $0x18] sm:$0xff] %v218
    // Predicated region
    $region26: #{tpu_custom_call.1} parent=1 // pred_check
      _
    $region27: #{tpu_custom_call.1} parent=1 // pred_check_branch
      %224 = sbr.rel (0) target = $region29
    $region28: #{tpu_custom_call.1} parent=1 // pred_region
      %s226 = ssub.s32 512, 512
      %227 = vsyncadd [#allocation4], %s226
      %s228 = sshll.u32 [#allocation7], 4
      %s229 = int_to_ptr.vmem [resolvable:$true] %s228
      %234 = dma.vmem_to_hbm [thread:$0]  %s229, 512, %s3, [#allocation4], 256, 256, 16
    $region29: #{tpu_custom_call.1} parent=1 // pred_fallthru
      _
    // Predicated region
    $region30: #{tpu_custom_call.1} parent=1 // pred_check
      _
    $region31: #{tpu_custom_call.1} parent=1 // pred_check_branch
      %236 = sbr.rel (0) target = $region33
    $region32: #{tpu_custom_call.1} parent=1 // pred_region
      %237 = dma.done [#allocation4], 512
    $region33: #{tpu_custom_call.1} parent=1 // pred_fallthru
      _
    %238 = vsyncpa [#allocation3], 1
    %239 = vsyncpa [#allocation6], 1
    %240 = vsyncpa [#allocation4], 1

</llo_original>
